<compile_context>
chip_gen: v5e
topology: v5e:2x2
jax: 0.10.0
libtpu: 0.0.40
codegen_flags: <defaults>
</compile_context>

<pallas_src>
import jax
import jax.numpy as jnp
from jax.experimental import pallas as pl
from jax.experimental.pallas import tpu as pltpu

IN_FEATURES = 10
OUT_FEATURES = 50
SMALL_B = 256        # single-block (no grid) path below this batch size
DEFAULT_TM = 2048    # batch rows per block for the tiled path


def _fc2_kernel(x_ref, w_ref, b_ref, o_ref):
    # One MXU pass: (TM, IN) x (IN, OUT), accumulate in f32, then
    # broadcast-add the bias row on the VPU.  Mosaic pads the tiny operands
    # to (8,128) vreg tiles internally; we never pay for that padding in HBM.
    acc = jnp.dot(x_ref[...], w_ref[...], preferred_element_type=jnp.float32)
    o_ref[...] = (acc + b_ref[...]).astype(o_ref.dtype)


def _round_up(n, m):
    return ((n + m - 1) // m) * m


def fc2_forward(x, w_t, b, *, tm=DEFAULT_TM):
    """x: (B, IN) f32, w_t: (IN, OUT) f32, b: (1, OUT) f32 -> (B, OUT) f32."""
    B = x.shape[0]

    if B <= SMALL_B:
        # ---- small-batch path: single straight-line block, no grid, no
        # pipeline machinery, no padding of any kind.
        return pl.pallas_call(
            _fc2_kernel,
            out_shape=jax.ShapeDtypeStruct((B, OUT_FEATURES), jnp.float32),
            in_specs=[
                pl.BlockSpec(memory_space=pltpu.MemorySpace.VMEM),
                pl.BlockSpec(memory_space=pltpu.MemorySpace.VMEM),
                pl.BlockSpec(memory_space=pltpu.MemorySpace.VMEM),
            ],
            out_specs=pl.BlockSpec(memory_space=pltpu.MemorySpace.VMEM),
        )(x, w_t, b)

    # ---- large-batch path: tile the batch, keep weight/bias VMEM-resident
    # (index_map always (0, 0) => no re-DMA after the first step), batch axis
    # "parallel" so v7x shards it across its 2 TensorCores.
    # Ensure at least 2 blocks so v7x never idles a core; keep tm a multiple
    # of 8 (sublane alignment of the block's second-to-last dim).
    tm_eff = min(tm, _round_up(pl.cdiv(B, 2), 8))
    grid = (pl.cdiv(B, tm_eff),)

    # Note: when tm_eff does not divide B, the last block's out-of-bounds x
    # rows are read uninitialized; their matmul results are discarded by the
    # masked output write, so the visible (B, 50) result is exact.
    return pl.pallas_call(
        _fc2_kernel,
        out_shape=jax.ShapeDtypeStruct((B, OUT_FEATURES), jnp.float32),
        grid=grid,
        in_specs=[
            pl.BlockSpec((tm_eff, IN_FEATURES), lambda i: (i, 0)),
            pl.BlockSpec((IN_FEATURES, OUT_FEATURES), lambda i: (0, 0)),
            pl.BlockSpec((1, OUT_FEATURES), lambda i: (0, 0)),
        ],
        out_specs=pl.BlockSpec((tm_eff, OUT_FEATURES), lambda i: (i, 0)),
        compiler_params=pltpu.CompilerParams(
            dimension_semantics=("parallel",),
        ),
    )(x, w_t, b)


def init_params(key):
    # Deterministic init mimicking nn.Linear default: U(-1/sqrt(fan_in), +).
    kw, kb = jax.random.split(key)
    bound = 1.0 / jnp.sqrt(jnp.float32(IN_FEATURES))
    # PyTorch weight shape is (OUT, IN); store it pre-transposed as (IN, OUT).
    w_t = jax.random.uniform(
        kw, (IN_FEATURES, OUT_FEATURES), jnp.float32, minval=-bound, maxval=bound
    )
    b = jax.random.uniform(
        kb, (1, OUT_FEATURES), jnp.float32, minval=-bound, maxval=bound
    )
    return w_t, b


if __name__ == "__main__":
    key = jax.random.PRNGKey(0)
    kx, kx2, kx3, kp = jax.random.split(key, 4)
    w_t, b = init_params(kp)

    # Small-batch path (typical module usage).
    batch = 8
    x = jax.random.normal(kx, (batch, IN_FEATURES), dtype=jnp.float32)
    out = fc2_forward(x, w_t, b)
    jax.block_until_ready(out)
    ref = x @ w_t + b
    assert out.shape == (batch, OUT_FEATURES)
    assert jnp.allclose(out, ref, atol=1e-5, rtol=1e-5)

    # Tiled path, evenly divisible blocks (2 parallel blocks of 600 rows).
    big_batch = 1200
    x2 = jax.random.normal(kx2, (big_batch, IN_FEATURES), dtype=jnp.float32)
    out2 = fc2_forward(x2, w_t, b)
    jax.block_until_ready(out2)
    ref2 = x2 @ w_t + b
    assert out2.shape == (big_batch, OUT_FEATURES)
    assert jnp.allclose(out2, ref2, atol=1e-5, rtol=1e-5)

    # Tiled path with a ragged last block (exercises masked tail writes).
    ragged_batch = 1000
    x3 = jax.random.normal(kx3, (ragged_batch, IN_FEATURES), dtype=jnp.float32)
    out3 = fc2_forward(x3, w_t, b)
    jax.block_until_ready(out3)
    ref3 = x3 @ w_t + b
    assert out3.shape == (ragged_batch, OUT_FEATURES)
    assert jnp.allclose(out3, ref3, atol=1e-5, rtol=1e-5)

    print("KERNEL_OK")
</pallas_src>

<mosaic_0001>
module attributes {stable_mosaic.version = 11 : i64} {
  func.func @_fc2_kernel(%arg0: memref<8x10xf32, #tpu.memory_space<vmem>>, %arg1: memref<10x50xf32, #tpu.memory_space<vmem>>, %arg2: memref<1x50xf32, #tpu.memory_space<vmem>>, %arg3: memref<8x50xf32, #tpu.memory_space<vmem>>) attributes {dimension_semantics = [], scalar_prefetch = 0 : i64, scratch_operands = 0 : i64, tpu.core_type = #tpu.core_type<tc>} {
    %c0 = arith.constant 0 : index
    %c0_0 = arith.constant 0 : index
    %0 = vector.load %arg0[%c0, %c0_0] : memref<8x10xf32, #tpu.memory_space<vmem>>, vector<8x10xf32>
    %c0_1 = arith.constant 0 : index
    %c0_2 = arith.constant 0 : index
    %1 = vector.load %arg1[%c0_1, %c0_2] : memref<10x50xf32, #tpu.memory_space<vmem>>, vector<10x50xf32>
    %cst = arith.constant dense<0.000000e+00> : vector<8x50xf32>
    %2 = tpu.matmul %0, %1, %cst {dimension_numbers = #tpu.dot_dimension_numbers<[1], [0], [0], [1], [0, 0, 1, 1], [], []>} : vector<8x10xf32>, vector<10x50xf32>, vector<8x50xf32> -> vector<8x50xf32>
    %c0_3 = arith.constant 0 : index
    %c0_4 = arith.constant 0 : index
    %3 = vector.load %arg2[%c0_3, %c0_4] : memref<1x50xf32, #tpu.memory_space<vmem>>, vector<1x50xf32>
    %4 = vector.broadcast %3 : vector<1x50xf32> to vector<8x50xf32>
    %5 = arith.addf %2, %4 : vector<8x50xf32>
    %c0_5 = arith.constant 0 : index
    %c0_6 = arith.constant 0 : index
    %6 = vector.load %arg3[%c0_5, %c0_6] : memref<8x50xf32, #tpu.memory_space<vmem>>, vector<8x50xf32>
    tpu.vector_store %arg3[%c0_5, %c0_6], %5 {strides = array<i32>} : memref<8x50xf32, #tpu.memory_space<vmem>>, vector<8x50xf32>,
    return
  }
}

</mosaic_0001>

<llo_original>
// kernel: tpu_custom_call.1
$region0: #{tpu_custom_call.1}
  #allocation0 [shape = 'u32[]', space=smem, size = 0x4, offset = 0x4, fixed_abs, tag = 'smem constant byte address 0x4 - core index']
  #allocation1 [shape = 'u32[72,128]{1,0:T(1,128)}', space=vmem, size = 0x9000, scoped, tag = 'internal scratch']
  %s0 = inlined_call_operand.hbm [shape: f32[8,10], index: 0, kind: input, shape index: {}]
  %s1 = inlined_call_operand.hbm [shape: f32[10,50], index: 1, kind: input, shape index: {}]
  %s2 = inlined_call_operand.vmem [shape: f32[1,50], index: 2, kind: input, shape index: {}]
  %s3 = inlined_call_operand.hbm [shape: f32[8,50], index: 3, kind: output, shape index: {}]
  %s4 = sld [smem:[#allocation0]]
  $region30: #{tpu_custom_call.1} parent=0
    _
  %s6 = ssub.s32 1, %s4
  %s7 = scalar_select 0, %s6, %s4
  $region1: #{tpu_custom_call.1} parent=0
    #allocation2 [shape = 'u8[4096]{0}', space=vmem, size = 0x1000, scoped, tag = 'input window, operand 0, single buffered']
    #allocation3 [shape = 's32[1]{0}', space=sflag, size = 0x4, scoped, tag = 'scoped memory for tpu_custom_call.1']
    #allocation4 [shape = 's32[1]{0}', space=sflag, size = 0x4, scoped, tag = 'scoped memory for tpu_custom_call.1']
    #allocation5 [shape = 'u8[8192]{0}', space=vmem, size = 0x2000, scoped, tag = 'input window, operand 1, single buffered']
    #allocation6 [shape = 's32[1]{0}', space=sflag, size = 0x4, scoped, tag = 'scoped memory for tpu_custom_call.1']
    #allocation7 [shape = 'u8[4096]{0}', space=vmem, size = 0x1000, scoped, tag = 'output window, operand 0, single buffered']
    %8 = vsyncpa [#allocation3], 0
    %9 = vsyncpa [#allocation6], 0
    %10 = vsyncpa [#allocation4], 0
    // Predicated region
    $region2: #{tpu_custom_call.1} parent=1 // pred_check
      _
    $region3: #{tpu_custom_call.1} parent=1 // pred_check_branch
      %12 = sbr.rel (0) target = $region5
    $region4: #{tpu_custom_call.1} parent=1 // pred_region
      %14 = vsyncadd [#allocation3], 0
      %s16 = sshll.u32 %s0, 4
      %s17 = int_to_ptr.hbm [resolvable:$true] %s16
      %s18 = sshll.u32 [#allocation2], 4
      %s19 = int_to_ptr.vmem [resolvable:$true] %s18
      %21 = dma.hbm_to_vmem [thread:$0]  %s17, 128, %s19, [#allocation3]
    $region5: #{tpu_custom_call.1} parent=1 // pred_fallthru
      _
    // Predicated region
    $region6: #{tpu_custom_call.1} parent=1 // pred_check
      _
    $region7: #{tpu_custom_call.1} parent=1 // pred_check_branch
      %23 = sbr.rel (0) target = $region9
    $region8: #{tpu_custom_call.1} parent=1 // pred_region
      %25 = vsyncadd [#allocation6], 0
      %s26 = sshll.u32 %s1, 4
      %s27 = int_to_ptr.hbm [resolvable:$true] %s26
      %s28 = sshll.u32 [#allocation5], 4
      %s29 = int_to_ptr.vmem [resolvable:$true] %s28
      %34 = dma.hbm_to_vmem [thread:$0]  %s27, 256, %s29, [#allocation6], 128, 128, 8
    $region9: #{tpu_custom_call.1} parent=1 // pred_fallthru
      _
    // Predicated region
    $region10: #{tpu_custom_call.1} parent=1 // pred_check
      _
    $region11: #{tpu_custom_call.1} parent=1 // pred_check_branch
      %36 = sbr.rel (0) target = $region13
    $region12: #{tpu_custom_call.1} parent=1 // pred_region
      _
    $region13: #{tpu_custom_call.1} parent=1 // pred_fallthru
      _
    // Predicated region
    $region14: #{tpu_custom_call.1} parent=1 // pred_check
      _
    $region15: #{tpu_custom_call.1} parent=1 // pred_check_branch
      %38 = sbr.rel (0) target = $region17
    $region16: #{tpu_custom_call.1} parent=1 // pred_region
      %40 = dma.done [#allocation3], 128
    $region17: #{tpu_custom_call.1} parent=1 // pred_fallthru
      _
    // Predicated region
    $region18: #{tpu_custom_call.1} parent=1 // pred_check
      _
    $region19: #{tpu_custom_call.1} parent=1 // pred_check_branch
      %42 = sbr.rel (0) target = $region21
    $region20: #{tpu_custom_call.1} parent=1 // pred_region
      %44 = dma.done [#allocation6], 256
    $region21: #{tpu_custom_call.1} parent=1 // pred_fallthru
      _
    %v45 = vld [vmem:[#allocation2] sm:$0xff]
    %v46 = vld [vmem:[#allocation5] sm:$0xff]
    %v47 = vld [vmem:[#allocation5 + $0x8] sm:$0x3]
    %v48 = vld [vmem:[%s2] sm:$0x1]
    %v50 = vperm.slane %v48, 0
    %vm52 = vcmask 80896
    %v54 = vsel %vm52, %v45, 0
    %vm56 = vcmask 1041408
    %v58 = vsel %vm56, %v47, 0
    %60 = vmatpush.msra.mxu0 0.0
    %61 = vmatpush.msra.mxu0 0.0
    %62 = vmatpush.msra.mxu0 0.0
    %63 = vmatpush.msra.mxu0 0.0
    %64 = vmatpush.msra.mxu0 0.0
    %65 = vmatpush.msra.mxu0 0.0
    %66 = vmatpush.msra.mxu0 0.0
    %67 = vmatpush.msra.mxu0 0.0
    %68 = vmatpush.msra.mxu0 0.0
    %69 = vmatpush.msra.mxu0 0.0
    %70 = vmatpush.msra.mxu0 0.0
    %71 = vmatpush.msra.mxu0 0.0
    %72 = vmatpush.msra.mxu0 0.0
    %73 = vmatpush.msra.mxu0 0.0
    %74 = vmatpush.msra.mxu0 %v58
    %75 = vmatpush.msra.mxu0 %v46
    %76 = vmatmul.f32.gmra.mxu0 %v54
    %v77 = vpop.f32.mrf.mxu0
    %v78 = vadd.f32 %v50, %v77
    %79 = vdwg.mxu0
    %vm80 = vcmask 408576
    %81 = vst.msk [vmem:[#allocation7] sm:$0xff] %vm80, %v78
    // Predicated region
    $region22: #{tpu_custom_call.1} parent=1 // pred_check
      _
    $region23: #{tpu_custom_call.1} parent=1 // pred_check_branch
      %83 = sbr.rel (0) target = $region25
    $region24: #{tpu_custom_call.1} parent=1 // pred_region
      %85 = vsyncadd [#allocation4], 0
      %s87 = sshll.u32 [#allocation7], 4
      %s88 = int_to_ptr.vmem [resolvable:$true] %s87
      %s89 = sshll.u32 %s3, 4
      %s90 = int_to_ptr.hbm [resolvable:$true] %s89
      %92 = dma.vmem_to_hbm [thread:$0]  %s88, 128, %s90, [#allocation4]
    $region25: #{tpu_custom_call.1} parent=1 // pred_fallthru
      _
    // Predicated region
    $region26: #{tpu_custom_call.1} parent=1 // pred_check
      _
    $region27: #{tpu_custom_call.1} parent=1 // pred_check_branch
      %94 = sbr.rel (0) target = $region29
    $region28: #{tpu_custom_call.1} parent=1 // pred_region
      %96 = dma.done [#allocation4], 128
    $region29: #{tpu_custom_call.1} parent=1 // pred_fallthru
      _
    %97 = vsyncpa [#allocation3], 1
    %98 = vsyncpa [#allocation6], 1
    %99 = vsyncpa [#allocation4], 1

</llo_original>
